<compile_context>
chip_gen: v5e
topology: v5e:2x2
jax: 0.10.0
libtpu: 0.0.40
codegen_flags: <defaults>
</compile_context>

<pallas_src>
import jax
import jax.numpy as jnp
from jax.experimental import pallas as pl
from jax.experimental.pallas import tpu as pltpu


def _round_up(x, m):
    return ((x + m - 1) // m) * m


def fm_kernel(bias_ref, lr_w_ref, emb_ref, out_ref):
    # bias_ref : [1]        f32 (SMEM)
    # lr_w_ref : [F,   TB]  f32/bf16 (batch lane-dense)
    # emb_ref  : [F*D, TB]  f32/bf16 (batch lane-dense, fields flattened)
    # out_ref  : [1,   TB]  f32
    num_fields = lr_w_ref.shape[0]
    d = emb_ref.shape[0] // num_fields

    # --- Fused field reduction: one unrolled VPU pass, f32 accumulation ---
    e0 = emb_ref[pl.ds(0, d), :].astype(jnp.float32)       # [D, TB]
    s = e0
    ss = e0 * e0
    for f in range(1, num_fields):                         # F small & static
        e = emb_ref[pl.ds(f * d, d), :].astype(jnp.float32)
        s = s + e
        ss = ss + e * e

    # --- InnerProductLayer(output='sum'): 0.5*((sum emb)^2 - sum emb^2) ---
    bi = 0.5 * (s * s - ss)                                # [D, TB] f32
    dot_out = jnp.sum(bi, axis=0, keepdims=True)           # [1, TB] sublane reduce

    # --- LR_Layer: sum per-field weights over fields, add bias ---
    lr_out = jnp.sum(lr_w_ref[...].astype(jnp.float32), axis=0, keepdims=True)

    # --- FM_Layer: add; final_activation is None. Lane-dense store. ---
    out_ref[...] = dot_out + lr_out + bias_ref[0]


def fm_layer_forward(bias, lr_w, feature_emb, *, tb=4096):
    """bias: [1] f32, lr_w: [B, F], feature_emb: [B, F, D] (f32 or bf16) -> [B, 1] f32."""
    B, F, D = feature_emb.shape

    # Layout plumbing: batch to the lane (last) axis, fields flattened.
    # allow_input_fusion below lets XLA fuse this producer into the pallas_call
    # input DMA instead of materializing an extra HBM copy.
    emb_t = jnp.transpose(feature_emb, (1, 2, 0)).reshape(F * D, B)   # [F*D, B]
    lr_t = jnp.transpose(lr_w, (1, 0))                                # [F, B]

    # Batch tile: lane multiple, capped by the lane-rounded batch size; keep at
    # least 2 grid steps (megacore) when the batch is big enough.
    b_lanes = _round_up(B, 128)
    tb = min(tb, b_lanes)
    if b_lanes >= 256 and pl.cdiv(B, tb) < 2:
        tb = _round_up(b_lanes // 2, 128)
    grid = pl.cdiv(B, tb)

    out = pl.pallas_call(
        fm_kernel,
        out_shape=jax.ShapeDtypeStruct((1, B), jnp.float32),
        grid=(grid,),
        in_specs=[
            pl.BlockSpec(memory_space=pltpu.SMEM),              # bias scalar
            pl.BlockSpec((F, tb), lambda i: (0, i)),            # lr weights [F, B]
            pl.BlockSpec((F * D, tb), lambda i: (0, i)),        # embeddings [F*D, B]
        ],
        out_specs=pl.BlockSpec((1, tb), lambda i: (0, i)),
        compiler_params=pltpu.CompilerParams(
            dimension_semantics=("parallel",),
            allow_input_fusion=[2],
        ),
    )(bias, lr_t, emb_t)

    return out[0].reshape(B, 1)


def reference_forward(bias, lr_w, feature_emb):
    lr_w = lr_w.astype(jnp.float32)
    feature_emb = feature_emb.astype(jnp.float32)
    lr_out = jnp.sum(lr_w, axis=1, keepdims=True) + bias[0]
    sum_emb = jnp.sum(feature_emb, axis=1)
    sum_sq = jnp.sum(feature_emb ** 2, axis=1)
    dot_out = 0.5 * jnp.sum(sum_emb ** 2 - sum_sq, axis=-1, keepdims=True)
    return dot_out + lr_out


if __name__ == "__main__":
    key = jax.random.PRNGKey(0)
    B, F, D, V = 8, 6, 16, 20   # batch, num fields, embedding dim, vocab per field

    k1, k2, k3 = jax.random.split(key, 3)

    # Synthetic module parameters:
    #   - LR embedding tables: F tables of shape [V, 1] -> stored here as [F, V]
    #   - bias: [1] (zeros in the module; perturbed to make the test non-trivial)
    lr_tables = 0.01 * jax.random.normal(k1, (F, V), dtype=jnp.float32)
    bias = jnp.asarray([0.1], dtype=jnp.float32)

    # Inputs: categorical X [B, F] and feature_emb_list stacked as [B, F, D].
    X = jax.random.randint(k2, (B, F), 0, V)
    feature_emb = jax.random.normal(k3, (B, F, D), dtype=jnp.float32)

    # Glue: per-field LR weight gather (torch nn.Embedding lookup equivalent).
    lr_w = lr_tables[jnp.arange(F)[None, :], X]            # [B, F]

    # f32 path (matches the PyTorch module exactly).
    out = fm_layer_forward(bias, lr_w, feature_emb)
    out = jax.block_until_ready(out)
    ref = reference_forward(bias, lr_w, feature_emb)
    assert out.shape == (B, 1)
    assert jnp.allclose(out, ref, atol=1e-5, rtol=1e-5), (out, ref)

    # bf16 input path (halved HBM traffic; f32 accumulation in-kernel).
    lr_w_bf16 = lr_w.astype(jnp.bfloat16)
    feature_emb_bf16 = feature_emb.astype(jnp.bfloat16)
    out_bf16 = jax.block_until_ready(
        fm_layer_forward(bias, lr_w_bf16, feature_emb_bf16))
    ref_bf16 = reference_forward(bias, lr_w_bf16, feature_emb_bf16)
    assert jnp.allclose(out_bf16, ref_bf16, atol=1e-4, rtol=1e-4), (out_bf16, ref_bf16)

    print("KERNEL_OK")
</pallas_src>

<mosaic_0001>
module attributes {stable_mosaic.version = 11 : i64} {
  func.func @fm_kernel(%arg0: i32, %arg1: memref<1xf32, #tpu.memory_space<smem>>, %arg2: memref<6x128xf32, #tpu.memory_space<vmem>>, %arg3: memref<96x128xf32, #tpu.memory_space<vmem>>, %arg4: memref<1x128xf32, #tpu.memory_space<vmem>>) attributes {dimension_semantics = [#tpu.dimension_semantics<parallel>], iteration_bounds = array<i64: 1>, scalar_prefetch = 0 : i64, scratch_operands = 0 : i64, tpu.core_type = #tpu.core_type<tc>, window_params = [{transform_indices = @transform_0, window_bounds = array<i64: 1>}, {transform_indices = @transform_1, window_bounds = array<i64: 6, 128>}, {transform_indices = @transform_2, window_bounds = array<i64: 96, 128>}, {transform_indices = @transform_3, window_bounds = array<i64: 1, 128>}]} {
    %c0 = arith.constant 0 : index
    %c0_0 = arith.constant 0 : index
    %0 = vector.load %arg3[%c0, %c0_0] : memref<96x128xf32, #tpu.memory_space<vmem>>, vector<16x128xf32>
    %1 = arith.mulf %0, %0 : vector<16x128xf32>
    %c16 = arith.constant 16 : index
    %c0_1 = arith.constant 0 : index
    %2 = vector.load %arg3[%c16, %c0_1] : memref<96x128xf32, #tpu.memory_space<vmem>>, vector<16x128xf32>
    %3 = arith.addf %0, %2 : vector<16x128xf32>
    %4 = arith.mulf %2, %2 : vector<16x128xf32>
    %5 = arith.addf %1, %4 : vector<16x128xf32>
    %c32 = arith.constant 32 : index
    %c0_2 = arith.constant 0 : index
    %6 = vector.load %arg3[%c32, %c0_2] : memref<96x128xf32, #tpu.memory_space<vmem>>, vector<16x128xf32>
    %7 = arith.addf %3, %6 : vector<16x128xf32>
    %8 = arith.mulf %6, %6 : vector<16x128xf32>
    %9 = arith.addf %5, %8 : vector<16x128xf32>
    %c48 = arith.constant 48 : index
    %c0_3 = arith.constant 0 : index
    %10 = vector.load %arg3[%c48, %c0_3] : memref<96x128xf32, #tpu.memory_space<vmem>>, vector<16x128xf32>
    %11 = arith.addf %7, %10 : vector<16x128xf32>
    %12 = arith.mulf %10, %10 : vector<16x128xf32>
    %13 = arith.addf %9, %12 : vector<16x128xf32>
    %c64 = arith.constant 64 : index
    %c0_4 = arith.constant 0 : index
    %14 = vector.load %arg3[%c64, %c0_4] : memref<96x128xf32, #tpu.memory_space<vmem>>, vector<16x128xf32>
    %15 = arith.addf %11, %14 : vector<16x128xf32>
    %16 = arith.mulf %14, %14 : vector<16x128xf32>
    %17 = arith.addf %13, %16 : vector<16x128xf32>
    %c80 = arith.constant 80 : index
    %c0_5 = arith.constant 0 : index
    %18 = vector.load %arg3[%c80, %c0_5] : memref<96x128xf32, #tpu.memory_space<vmem>>, vector<16x128xf32>
    %19 = arith.addf %15, %18 : vector<16x128xf32>
    %20 = arith.mulf %18, %18 : vector<16x128xf32>
    %21 = arith.addf %17, %20 : vector<16x128xf32>
    %22 = arith.mulf %19, %19 : vector<16x128xf32>
    %23 = arith.subf %22, %21 : vector<16x128xf32>
    %cst = arith.constant 5.000000e-01 : f32
    %24 = vector.broadcast %cst : f32 to vector<16x128xf32>
    %25 = arith.mulf %24, %23 : vector<16x128xf32>
    %cst_6 = arith.constant dense<0.000000e+00> : vector<128xf32>
    %26 = vector.multi_reduction <add>, %25, %cst_6 [0] : vector<16x128xf32> to vector<128xf32>
    %27 = vector.shape_cast %26 : vector<128xf32> to vector<1x128xf32>
    %c0_7 = arith.constant 0 : index
    %c0_8 = arith.constant 0 : index
    %28 = vector.load %arg2[%c0_7, %c0_8] : memref<6x128xf32, #tpu.memory_space<vmem>>, vector<6x128xf32>
    %cst_9 = arith.constant dense<0.000000e+00> : vector<128xf32>
    %29 = vector.multi_reduction <add>, %28, %cst_9 [0] : vector<6x128xf32> to vector<128xf32>
    %30 = vector.shape_cast %29 : vector<128xf32> to vector<1x128xf32>
    %31 = arith.addf %27, %30 : vector<1x128xf32>
    %c0_10 = arith.constant 0 : index
    %32 = memref.load %arg1[%c0_10] : memref<1xf32, #tpu.memory_space<smem>>
    %33 = vector.broadcast %32 : f32 to vector<1x128xf32>
    %34 = arith.addf %31, %33 : vector<1x128xf32>
    %c0_11 = arith.constant 0 : index
    %c0_12 = arith.constant 0 : index
    %35 = vector.load %arg4[%c0_11, %c0_12] : memref<1x128xf32, #tpu.memory_space<vmem>>, vector<1x128xf32>
    tpu.vector_store %arg4[%c0_11, %c0_12], %34 {strides = array<i32>} : memref<1x128xf32, #tpu.memory_space<vmem>>, vector<1x128xf32>,
    return
  }
  func.func @transform_0(%arg0: i32) -> i32 {
    %c0_i32 = arith.constant 0 : i32
    %c0_i32_0 = arith.constant 0 : i32
    return %c0_i32 : i32
  }
  func.func @transform_1(%arg0: i32) -> (i32, i32) {
    %c0_i32 = arith.constant 0 : i32
    %c0_i32_0 = arith.constant 0 : i32
    return %c0_i32, %arg0 : i32, i32
  }
  func.func @transform_2(%arg0: i32) -> (i32, i32) {
    %c0_i32 = arith.constant 0 : i32
    %c0_i32_0 = arith.constant 0 : i32
    return %c0_i32, %arg0 : i32, i32
  }
  func.func @transform_3(%arg0: i32) -> (i32, i32) {
    %c0_i32 = arith.constant 0 : i32
    %c0_i32_0 = arith.constant 0 : i32
    return %c0_i32, %arg0 : i32, i32
  }
}

</mosaic_0001>

<llo_original>
// kernel: tpu_custom_call.1
$region0: #{tpu_custom_call.1}
  #allocation0 [shape = 'u32[]', space=smem, size = 0x4, offset = 0x4, fixed_abs, tag = 'smem constant byte address 0x4 - core index']
  #allocation1 [shape = 'u32[72,128]{1,0:T(1,128)}', space=vmem, size = 0x9000, scoped, tag = 'internal scratch']
  #allocation2 [shape = 'f32[1]{0:T(128)S(6)}', space=smem, size = 0x200, scoped, tag = 'scoped memory for tpu_custom_call.1']
  %s0 = inlined_call_operand.<no memory space> [shape: f32[1], index: 0, kind: input, shape index: {}]
  %s1 = inlined_call_operand.vmem [shape: f32[6,8], index: 1, kind: input, shape index: {}]
  %s2 = inlined_call_operand.vmem [shape: f32[96,8], index: 2, kind: input, shape index: {}]
  %s3 = inlined_call_operand.hbm [shape: f32[1,8], index: 3, kind: output, shape index: {}]
  %s4 = sld [smem:[#allocation0]]
  $region22: #{tpu_custom_call.1} parent=0
    _
  %s6 = ssub.s32 1, %s4
  %s7 = scalar_select 0, %s6, %s4
  %8 = sst [smem:[#allocation2]] %s0
  $region1: #{tpu_custom_call.1} parent=0
    #allocation3 [shape = 'u8[512]{0}', space=vmem, size = 0x400, scoped, tag = 'output window, operand 0, single buffered']
    #allocation4 [shape = 's32[1]{0}', space=sflag, size = 0x4, scoped, tag = 'scoped memory for tpu_custom_call.1']
    %9 = vsyncpa [#allocation4], 0
    // Predicated region
    $region2: #{tpu_custom_call.1} parent=1 // pred_check
      _
    $region3: #{tpu_custom_call.1} parent=1 // pred_check_branch
      %11 = sbr.rel (0) target = $region5
    $region4: #{tpu_custom_call.1} parent=1 // pred_region
      _
    $region5: #{tpu_custom_call.1} parent=1 // pred_fallthru
      _
    // Predicated region
    $region6: #{tpu_custom_call.1} parent=1 // pred_check
      _
    $region7: #{tpu_custom_call.1} parent=1 // pred_check_branch
      %13 = sbr.rel (0) target = $region9
    $region8: #{tpu_custom_call.1} parent=1 // pred_region
      _
    $region9: #{tpu_custom_call.1} parent=1 // pred_fallthru
      _
    // Predicated region
    $region10: #{tpu_custom_call.1} parent=1 // pred_check
      _
    $region11: #{tpu_custom_call.1} parent=1 // pred_check_branch
      %15 = sbr.rel (0) target = $region13
    $region12: #{tpu_custom_call.1} parent=1 // pred_region
      _
    $region13: #{tpu_custom_call.1} parent=1 // pred_fallthru
      _
    %v16 = vld [vmem:[%s2] sm:$0xff]
    %v17 = vld [vmem:[%s2 + $0x8] sm:$0xff]
    %v18 = vmul.f32 %v16, %v16
    %v19 = vmul.f32 %v17, %v17
    %v20 = vld [vmem:[%s2 + $0x10] sm:$0xff]
    %v21 = vld [vmem:[%s2 + $0x18] sm:$0xff]
    %v22 = vadd.f32 %v16, %v20
    %v23 = vadd.f32 %v17, %v21
    %v24 = vmul.f32 %v20, %v20
    %v25 = vmul.f32 %v21, %v21
    %v26 = vadd.f32 %v18, %v24
    %v27 = vadd.f32 %v19, %v25
    %v28 = vld [vmem:[%s2 + $0x20] sm:$0xff]
    %v29 = vld [vmem:[%s2 + $0x28] sm:$0xff]
    %v30 = vadd.f32 %v22, %v28
    %v31 = vadd.f32 %v23, %v29
    %v32 = vmul.f32 %v28, %v28
    %v33 = vmul.f32 %v29, %v29
    %v34 = vadd.f32 %v26, %v32
    %v35 = vadd.f32 %v27, %v33
    %v36 = vld [vmem:[%s2 + $0x30] sm:$0xff]
    %v37 = vld [vmem:[%s2 + $0x38] sm:$0xff]
    %v38 = vadd.f32 %v30, %v36
    %v39 = vadd.f32 %v31, %v37
    %v40 = vmul.f32 %v36, %v36
    %v41 = vmul.f32 %v37, %v37
    %v42 = vadd.f32 %v34, %v40
    %v43 = vadd.f32 %v35, %v41
    %v44 = vld [vmem:[%s2 + $0x40] sm:$0xff]
    %v45 = vld [vmem:[%s2 + $0x48] sm:$0xff]
    %v46 = vadd.f32 %v38, %v44
    %v47 = vadd.f32 %v39, %v45
    %v48 = vmul.f32 %v44, %v44
    %v49 = vmul.f32 %v45, %v45
    %v50 = vadd.f32 %v42, %v48
    %v51 = vadd.f32 %v43, %v49
    %v52 = vld [vmem:[%s2 + $0x50] sm:$0xff]
    %v53 = vld [vmem:[%s2 + $0x58] sm:$0xff]
    %v54 = vadd.f32 %v46, %v52
    %v55 = vadd.f32 %v47, %v53
    %v56 = vmul.f32 %v52, %v52
    %v57 = vmul.f32 %v53, %v53
    %v58 = vadd.f32 %v50, %v56
    %v59 = vadd.f32 %v51, %v57
    %v60 = vmul.f32 %v54, %v54
    %v61 = vmul.f32 %v55, %v55
    %v62 = vsub.f32 %v60, %v58
    %v63 = vsub.f32 %v61, %v59
    %v64 = vmul.f32 %v62, 0.5
    %v65 = vmul.f32 %v63, 0.5
    %v66 = vadd.f32 %v64, %v65
    %v67 = vrot.slane %v66, 4
    %v68 = vadd.f32 %v66, %v67
    %v69 = vrot.slane %v68, 2
    %v70 = vadd.f32 %v68, %v69
    %v71 = vrot.slane %v70, 1
    %v72 = vadd.f32 %v70, %v71
    %v73 = vld [vmem:[%s1] sm:$0x3f]
    %vm74 = vcmask 1045504
    %v75 = vsel %vm74, %v73, 0.0
    %v76 = vrot.slane %v75, 4
    %v77 = vadd.f32 %v75, %v76
    %v78 = vrot.slane %v77, 2
    %v79 = vadd.f32 %v77, %v78
    %v80 = vrot.slane %v79, 1
    %v81 = vadd.f32 %v79, %v80
    %v82 = vadd.f32 %v72, %v81
    %s83 = sld [smem:[#allocation2]]
    %v84 = vstv %s83
    %v85 = vadd.f32 %v82, %v84
    %86 = vst [vmem:[#allocation3] sm:$0x1] %v85
    // Predicated region
    $region14: #{tpu_custom_call.1} parent=1 // pred_check
      _
    $region15: #{tpu_custom_call.1} parent=1 // pred_check_branch
      %88 = sbr.rel (0) target = $region17
    $region16: #{tpu_custom_call.1} parent=1 // pred_region
      %90 = vsyncadd [#allocation4], 0
      %s92 = sshll.u32 [#allocation3], 4
      %s93 = int_to_ptr.vmem [resolvable:$true] %s92
      %s94 = sshll.u32 %s3, 4
      %s95 = int_to_ptr.hbm [resolvable:$true] %s94
      %97 = dma.vmem_to_hbm [thread:$0]  %s93, 16, %s95, [#allocation4]
    $region17: #{tpu_custom_call.1} parent=1 // pred_fallthru
      _
    // Predicated region
    $region18: #{tpu_custom_call.1} parent=1 // pred_check
      _
    $region19: #{tpu_custom_call.1} parent=1 // pred_check_branch
      %99 = sbr.rel (0) target = $region21
    $region20: #{tpu_custom_call.1} parent=1 // pred_region
      %101 = dma.done [#allocation4], 16
    $region21: #{tpu_custom_call.1} parent=1 // pred_fallthru
      _
    %102 = vsyncpa [#allocation4], 1

</llo_original>
